<compile_context>
chip_gen: v5e
topology: v5e:2x2
jax: 0.10.0
libtpu: 0.0.40
codegen_flags: <defaults>
</compile_context>

<pallas_src>
import jax
import jax.numpy as jnp
from jax.experimental import pallas as pl
from jax.experimental.pallas import tpu as pltpu

LEAKY_SLOPE = 0.1
LANE = 128


def _round_up(v, m):
    return (v + m - 1) // m * m


# ---------------------------------------------------------------------------
# Pallas kernel: one GROUP of graphs per grid step (block-diagonal A_hat),
# both GraphConv layers + LeakyReLU fused, everything VMEM-resident.
# ---------------------------------------------------------------------------
def _gcn4_kernel(a_ref, x_ref, w1_ref, b1_ref, w2_ref, b2_ref, o_ref):
    a = a_ref[...]                     # (M, M)        bf16 block-diagonal A_hat
    x = x_ref[...]                     # (M, in_feats) bf16 (unpadded contraction dim)

    # Layer 1: GraphConv(in_feats, h_feats): feat @ W first, then aggregate.
    xw = jnp.dot(x, w1_ref[...], preferred_element_type=jnp.float32)      # (M, h_p) f32
    h = jnp.dot(a, xw.astype(jnp.bfloat16),
                preferred_element_type=jnp.float32) + b1_ref[...]          # (M, h_p) f32

    # LeakyReLU(0.1) + bias stay in f32 (v5e VPU has no bf16 path).
    h = jnp.where(h > 0, h, LEAKY_SLOPE * h)

    # Layer 2: GraphConv(h_feats, out_feats)
    hw = jnp.dot(h.astype(jnp.bfloat16), w2_ref[...],
                 preferred_element_type=jnp.float32)                       # (M, out_p) f32
    o_ref[...] = jnp.dot(a, hw.astype(jnp.bfloat16),
                         preferred_element_type=jnp.float32) + b2_ref[...]


# ---------------------------------------------------------------------------
# Jitted forward over pre-padded / pre-block-diagonalized inputs.
# ---------------------------------------------------------------------------
@jax.jit
def gcn4_forward_prepared(a_bd, x_flat, w1_p, b1_p, w2_p, b2_p):
    groups, M, _ = a_bd.shape          # M = G * N rows per grid step
    total_rows = x_flat.shape[0]       # = groups * M = B * N
    in_feats = x_flat.shape[1]
    h_p = w1_p.shape[1]
    out_p = w2_p.shape[1]

    # Advisory cost estimate from the actual per-step matmul shapes.
    flops = groups * 2 * M * (in_feats * h_p + M * h_p + h_p * out_p + M * out_p)
    bytes_accessed = (
        a_bd.size * 2 + x_flat.size * 2
        + groups * (w1_p.size * 2 + w2_p.size * 2 + b1_p.size * 4 + b2_p.size * 4)
        + total_rows * out_p * 4)

    return pl.pallas_call(
        _gcn4_kernel,
        out_shape=jax.ShapeDtypeStruct((total_rows, out_p), jnp.float32),
        grid=(groups,),
        in_specs=[
            pl.BlockSpec((None, M, M), lambda g: (g, 0, 0)),     # block-diag A_hat
            pl.BlockSpec((M, in_feats), lambda g: (g, 0)),       # X rows (unpadded feats)
            pl.BlockSpec((in_feats, h_p), lambda g: (0, 0)),     # W1 (resident)
            pl.BlockSpec((1, h_p), lambda g: (0, 0)),            # b1 (resident)
            pl.BlockSpec((h_p, out_p), lambda g: (0, 0)),        # W2 (resident)
            pl.BlockSpec((1, out_p), lambda g: (0, 0)),          # b2 (resident)
        ],
        out_specs=pl.BlockSpec((M, out_p), lambda g: (g, 0)),    # lane-dense store
        compiler_params=pltpu.CompilerParams(
            dimension_semantics=("parallel",),   # v7x: shard the 2 groups over 2 TCs
        ),
        cost_estimate=pl.CostEstimate(
            flops=flops, transcendentals=0, bytes_accessed=bytes_accessed),
    )(a_bd, x_flat, w1_p, b1_p, w2_p, b2_p)


# ---------------------------------------------------------------------------
# One-time preprocessing (hoisted out of the per-call path).
# ---------------------------------------------------------------------------
def pad_gcn4_params(w1, b1, w2, b2):
    """Pad lane dims (h, out) to multiples of 128, cast MXU operands to bf16."""
    in_feats, h_feats = w1.shape
    out_feats = w2.shape[1]
    h_p = _round_up(h_feats, LANE)
    out_p = _round_up(out_feats, LANE)

    w1_p = jnp.zeros((in_feats, h_p), jnp.bfloat16).at[:, :h_feats].set(
        w1.astype(jnp.bfloat16))
    b1_p = jnp.zeros((1, h_p), jnp.float32).at[:, :h_feats].set(
        b1.astype(jnp.float32))
    w2_p = jnp.zeros((h_p, out_p), jnp.bfloat16).at[:h_feats, :out_feats].set(
        w2.astype(jnp.bfloat16))
    b2_p = jnp.zeros((1, out_p), jnp.float32).at[:, :out_feats].set(
        b2.astype(jnp.float32))
    return w1_p, b1_p, w2_p, b2_p


def prepare_gcn4_inputs(a_hat, x, groups=None):
    """Group B graphs into `groups` block-diagonal adjacencies + flattened X."""
    B, N, _ = a_hat.shape
    if groups is None:
        groups = 2 if B % 2 == 0 else 1     # keep a 2-wide parallel grid for v7x
    G = B // groups
    assert groups * G == B, "batch must divide evenly into groups"

    # bd[s, g*N+n, h*N+m] = a_hat[s*G+g, n, m] if g == h else 0
    a_grp = a_hat.reshape(groups, G, N, N).astype(jnp.bfloat16)
    a_bd = jnp.einsum('gh,sgnm->sgnhm',
                      jnp.eye(G, dtype=jnp.bfloat16), a_grp
                      ).reshape(groups, G * N, G * N)

    x_flat = x.reshape(B * N, x.shape[-1]).astype(jnp.bfloat16)
    return a_bd, x_flat


def gcn4_forward(a_hat, x, w1_p, b1_p, w2_p, b2_p, out_feats):
    """Full forward: prep (block-diag + flatten) -> fused kernel -> unpad."""
    B, N, _ = a_hat.shape
    a_bd, x_flat = prepare_gcn4_inputs(a_hat, x)
    out_flat = gcn4_forward_prepared(a_bd, x_flat, w1_p, b1_p, w2_p, b2_p)
    return out_flat.reshape(B, N, -1)[:, :, :out_feats]


# ---------------------------------------------------------------------------
# Glue: deterministic graph + parameter construction (plain JAX)
# ---------------------------------------------------------------------------
def build_normalized_adjacency(n, key):
    """Undirected graph: ring + deterministic random chords, norm='both'."""
    idx = jnp.arange(n)
    src, dst = idx, (idx + 1) % n
    adj = jnp.zeros((n, n), jnp.float32)
    adj = adj.at[src, dst].set(1.0)
    adj = adj.at[dst, src].set(1.0)
    chord_src = jax.random.randint(key, (n // 2,), 0, n)
    chord_dst = (chord_src + n // 3 + 1) % n
    adj = adj.at[chord_src, chord_dst].set(1.0)
    adj = adj.at[chord_dst, chord_src].set(1.0)
    adj = adj * (1.0 - jnp.eye(n, dtype=jnp.float32))  # no self loops

    # Note: DGL's norm='both' would error on zero-in-degree nodes; we clip.
    deg = jnp.clip(adj.sum(axis=1), 1.0, None)
    d_inv_sqrt = 1.0 / jnp.sqrt(deg)
    return adj * d_inv_sqrt[:, None] * d_inv_sqrt[None, :]


def init_params(key, in_feats, h_feats, out_feats):
    k1, k2 = jax.random.split(key)
    lim1 = (6.0 / (in_feats + h_feats)) ** 0.5
    lim2 = (6.0 / (h_feats + out_feats)) ** 0.5
    w1 = jax.random.uniform(k1, (in_feats, h_feats), jnp.float32, -lim1, lim1)
    w2 = jax.random.uniform(k2, (h_feats, out_feats), jnp.float32, -lim2, lim2)
    b1 = jnp.zeros((1, h_feats), jnp.float32)   # GraphConv default: zero bias
    b2 = jnp.zeros((1, out_feats), jnp.float32)
    return w1, b1, w2, b2


def gcn4_reference(a_hat, x, w1, b1, w2, b2):
    """Pure-JAX f32 reference (batched)."""
    xw = jnp.einsum('bnf,fh->bnh', x, w1)
    h = jnp.einsum('bnm,bmh->bnh', a_hat, xw) + b1
    h = jnp.where(h > 0, h, LEAKY_SLOPE * h)
    hw = jnp.einsum('bnh,ho->bno', h, w2)
    return jnp.einsum('bnm,bmo->bno', a_hat, hw) + b2


if __name__ == "__main__":
    B, N, IN_FEATS, H_FEATS, OUT_FEATS = 8, 32, 16, 32, 1

    root = jax.random.PRNGKey(0)
    k_graphs, k_feat, k_param = jax.random.split(root, 3)

    graph_keys = jax.random.split(k_graphs, B)
    a_hat = jnp.stack([build_normalized_adjacency(N, k) for k in graph_keys])
    x = jax.random.normal(k_feat, (B, N, IN_FEATS), jnp.float32)
    w1, b1, w2, b2 = init_params(k_param, IN_FEATS, H_FEATS, OUT_FEATS)

    # One-time param padding (outside the per-call path).
    w1_p, b1_p, w2_p, b2_p = pad_gcn4_params(w1, b1, w2, b2)

    out = gcn4_forward(a_hat, x, w1_p, b1_p, w2_p, b2_p, OUT_FEATS)
    out = jax.block_until_ready(out)

    ref = gcn4_reference(a_hat, x, w1, b1, w2, b2)
    assert out.shape == (B, N, OUT_FEATS)
    # bf16 MXU operands (f32 accumulation) => allow ~few-% relative error.
    rel_err = jnp.max(jnp.abs(out - ref)) / (jnp.max(jnp.abs(ref)) + 1e-6)
    assert rel_err < 5e-2, f"mismatch vs reference: rel_err={rel_err}"

    print("KERNEL_OK")
</pallas_src>

<mosaic_0001>
module attributes {stable_mosaic.version = 11 : i64} {
  func.func @_gcn4_kernel(%arg0: i32, %arg1: memref<1x128x128xbf16, #tpu.memory_space<vmem>>, %arg2: memref<128x16xbf16, #tpu.memory_space<vmem>>, %arg3: memref<16x128xbf16, #tpu.memory_space<vmem>>, %arg4: memref<1x128xf32, #tpu.memory_space<vmem>>, %arg5: memref<128x128xbf16, #tpu.memory_space<vmem>>, %arg6: memref<1x128xf32, #tpu.memory_space<vmem>>, %arg7: memref<128x128xf32, #tpu.memory_space<vmem>>) attributes {dimension_semantics = [#tpu.dimension_semantics<parallel>], iteration_bounds = array<i64: 2>, scalar_prefetch = 0 : i64, scratch_operands = 0 : i64, tpu.core_type = #tpu.core_type<tc>, window_params = [{transform_indices = @transform_0, window_bounds = array<i64: 1, 128, 128>}, {transform_indices = @transform_1, window_bounds = array<i64: 128, 16>}, {pipeline_mode = #tpu.pipeline_mode<synchronous>, transform_indices = @transform_2, window_bounds = array<i64: 16, 128>}, {pipeline_mode = #tpu.pipeline_mode<synchronous>, transform_indices = @transform_3, window_bounds = array<i64: 1, 128>}, {pipeline_mode = #tpu.pipeline_mode<synchronous>, transform_indices = @transform_4, window_bounds = array<i64: 128, 128>}, {pipeline_mode = #tpu.pipeline_mode<synchronous>, transform_indices = @transform_5, window_bounds = array<i64: 1, 128>}, {transform_indices = @transform_6, window_bounds = array<i64: 128, 128>}]} {
    %c0 = arith.constant 0 : index
    %c0_0 = arith.constant 0 : index
    %c0_1 = arith.constant 0 : index
    %0 = vector.load %arg1[%c0, %c0_0, %c0_1] : memref<1x128x128xbf16, #tpu.memory_space<vmem>>, vector<1x128x128xbf16>
    %1 = vector.shape_cast %0 : vector<1x128x128xbf16> to vector<128x128xbf16>
    %c0_2 = arith.constant 0 : index
    %c0_3 = arith.constant 0 : index
    %2 = vector.load %arg2[%c0_2, %c0_3] : memref<128x16xbf16, #tpu.memory_space<vmem>>, vector<128x16xbf16>
    %c0_4 = arith.constant 0 : index
    %c0_5 = arith.constant 0 : index
    %3 = vector.load %arg3[%c0_4, %c0_5] : memref<16x128xbf16, #tpu.memory_space<vmem>>, vector<16x128xbf16>
    %cst = arith.constant dense<0.000000e+00> : vector<128x128xf32>
    %4 = tpu.matmul %2, %3, %cst {dimension_numbers = #tpu.dot_dimension_numbers<[1], [0], [0], [1], [0, 0, 1, 1], [], []>} : vector<128x16xbf16>, vector<16x128xbf16>, vector<128x128xf32> -> vector<128x128xf32>
    %5 = arith.truncf %4 : vector<128x128xf32> to vector<128x128xbf16>
    %cst_6 = arith.constant dense<0.000000e+00> : vector<128x128xf32>
    %6 = tpu.matmul %1, %5, %cst_6 {dimension_numbers = #tpu.dot_dimension_numbers<[1], [0], [0], [1], [0, 0, 1, 1], [], []>} : vector<128x128xbf16>, vector<128x128xbf16>, vector<128x128xf32> -> vector<128x128xf32>
    %c0_7 = arith.constant 0 : index
    %c0_8 = arith.constant 0 : index
    %7 = vector.load %arg4[%c0_7, %c0_8] : memref<1x128xf32, #tpu.memory_space<vmem>>, vector<1x128xf32>
    %8 = vector.broadcast %7 : vector<1x128xf32> to vector<128x128xf32>
    %9 = arith.addf %6, %8 : vector<128x128xf32>
    %cst_9 = arith.constant 0.000000e+00 : f32
    %10 = vector.broadcast %cst_9 : f32 to vector<128x128xf32>
    %11 = arith.cmpf ogt, %9, %10 : vector<128x128xf32>
    %cst_10 = arith.constant 1.000000e-01 : f32
    %12 = vector.broadcast %cst_10 : f32 to vector<128x128xf32>
    %13 = arith.mulf %12, %9 : vector<128x128xf32>
    %14 = arith.select %11, %9, %13 : vector<128x128xi1>, vector<128x128xf32>
    %15 = arith.truncf %14 : vector<128x128xf32> to vector<128x128xbf16>
    %c0_11 = arith.constant 0 : index
    %c0_12 = arith.constant 0 : index
    %16 = vector.load %arg5[%c0_11, %c0_12] : memref<128x128xbf16, #tpu.memory_space<vmem>>, vector<128x128xbf16>
    %cst_13 = arith.constant dense<0.000000e+00> : vector<128x128xf32>
    %17 = tpu.matmul %15, %16, %cst_13 {dimension_numbers = #tpu.dot_dimension_numbers<[1], [0], [0], [1], [0, 0, 1, 1], [], []>} : vector<128x128xbf16>, vector<128x128xbf16>, vector<128x128xf32> -> vector<128x128xf32>
    %18 = arith.truncf %17 : vector<128x128xf32> to vector<128x128xbf16>
    %cst_14 = arith.constant dense<0.000000e+00> : vector<128x128xf32>
    %19 = tpu.matmul %1, %18, %cst_14 {dimension_numbers = #tpu.dot_dimension_numbers<[1], [0], [0], [1], [0, 0, 1, 1], [], []>} : vector<128x128xbf16>, vector<128x128xbf16>, vector<128x128xf32> -> vector<128x128xf32>
    %c0_15 = arith.constant 0 : index
    %c0_16 = arith.constant 0 : index
    %20 = vector.load %arg6[%c0_15, %c0_16] : memref<1x128xf32, #tpu.memory_space<vmem>>, vector<1x128xf32>
    %21 = vector.broadcast %20 : vector<1x128xf32> to vector<128x128xf32>
    %22 = arith.addf %19, %21 : vector<128x128xf32>
    %c0_17 = arith.constant 0 : index
    %c0_18 = arith.constant 0 : index
    %23 = vector.load %arg7[%c0_17, %c0_18] : memref<128x128xf32, #tpu.memory_space<vmem>>, vector<128x128xf32>
    tpu.vector_store %arg7[%c0_17, %c0_18], %22 {strides = array<i32>} : memref<128x128xf32, #tpu.memory_space<vmem>>, vector<128x128xf32>,
    return
  }
  func.func @transform_0(%arg0: i32) -> (i32, i32, i32) {
    %c0_i32 = arith.constant 0 : i32
    %c0_i32_0 = arith.constant 0 : i32
    %c0_i32_1 = arith.constant 0 : i32
    return %arg0, %c0_i32, %c0_i32_0 : i32, i32, i32
  }
  func.func @transform_1(%arg0: i32) -> (i32, i32) {
    %c0_i32 = arith.constant 0 : i32
    %c0_i32_0 = arith.constant 0 : i32
    return %arg0, %c0_i32 : i32, i32
  }
  func.func @transform_2(%arg0: i32) -> (i32, i32) {
    %c0_i32 = arith.constant 0 : i32
    %c0_i32_0 = arith.constant 0 : i32
    %c0_i32_1 = arith.constant 0 : i32
    return %c0_i32, %c0_i32_0 : i32, i32
  }
  func.func @transform_3(%arg0: i32) -> (i32, i32) {
    %c0_i32 = arith.constant 0 : i32
    %c0_i32_0 = arith.constant 0 : i32
    %c0_i32_1 = arith.constant 0 : i32
    return %c0_i32, %c0_i32_0 : i32, i32
  }
  func.func @transform_4(%arg0: i32) -> (i32, i32) {
    %c0_i32 = arith.constant 0 : i32
    %c0_i32_0 = arith.constant 0 : i32
    %c0_i32_1 = arith.constant 0 : i32
    return %c0_i32, %c0_i32_0 : i32, i32
  }
  func.func @transform_5(%arg0: i32) -> (i32, i32) {
    %c0_i32 = arith.constant 0 : i32
    %c0_i32_0 = arith.constant 0 : i32
    %c0_i32_1 = arith.constant 0 : i32
    return %c0_i32, %c0_i32_0 : i32, i32
  }
  func.func @transform_6(%arg0: i32) -> (i32, i32) {
    %c0_i32 = arith.constant 0 : i32
    %c0_i32_0 = arith.constant 0 : i32
    return %arg0, %c0_i32 : i32, i32
  }
}

</mosaic_0001>

<llo_original>
// kernel: gcn4_forward_prepared.1
$region0: #{gcn4_forward_prepared.1}
  #allocation0 [shape = 'u32[]', space=smem, size = 0x4, offset = 0x4, fixed_abs, tag = 'smem constant byte address 0x4 - core index']
  #allocation1 [shape = 'u32[72,128]{1,0:T(1,128)}', space=vmem, size = 0x9000, scoped, tag = 'internal scratch']
  %s0 = inlined_call_operand.vmem [shape: bf16[2,128,128], index: 0, kind: input, shape index: {}]
  %s1 = inlined_call_operand.vmem [shape: bf16[256,16], index: 1, kind: input, shape index: {}]
  %s2 = inlined_call_operand.vmem [shape: bf16[16,128], index: 2, kind: input, shape index: {}]
  %s3 = inlined_call_operand.vmem [shape: f32[1,128], index: 3, kind: input, shape index: {}]
  %s4 = inlined_call_operand.hbm [shape: bf16[128,128], index: 4, kind: input, shape index: {}]
  %s5 = inlined_call_operand.vmem [shape: f32[1,128], index: 5, kind: input, shape index: {}]
  %s6 = inlined_call_operand.hbm [shape: f32[256,128], index: 6, kind: output, shape index: {}]
  %s7 = sld [smem:[#allocation0]]
  $region61: #{gcn4_forward_prepared.1} parent=0
    _
  %s9 = ssub.s32 1, %s7
  %s10 = scalar_select 0, %s9, %s7
  $region1: #{gcn4_forward_prepared.1} parent=0
    #allocation2 [shape = 'u8[32768]{0}', space=vmem, size = 0x8000, scoped, tag = 'input window, operand 4, single buffered']
    #allocation3 [shape = 's32[2]{0}', space=sflag, size = 0x8, scoped, tag = 'scoped memory for gcn4_forward_prepared.1']
    #allocation4 [shape = 's32[2]{0}', space=sflag, size = 0x8, scoped, tag = 'scoped memory for gcn4_forward_prepared.1']
    #allocation5 [shape = 'u8[131072]{0}', space=vmem, size = 0x20000, scoped, tag = 'output window, operand 0']
    %11 = vsyncpa [#allocation3], 0
    %12 = vsyncpa [#allocation4], 0
    %s13 = scalar_lea.sflag [#allocation4], 1
    %14 = vsyncpa %s13, 0
    loop: start=0, step=1, limit=4
    $region2: #{gcn4_forward_prepared.1} parent=1 // loop_pre_header
      _
    $region3: #{gcn4_forward_prepared.1} parent=1 // loop_header
      %s16 = sphi 0, %s20
      %p17 = scmp.ge.s32.totalorder %s16, 4
      %s26 = sphi 0, %s28
      %s29 = sphi 0, %s26
      %s30 = sphi 0, %s29
      %s46 = sphi 0, %s30
      %s52 = sphi 0, %s54
      %s55 = sphi 0, %s52
      %s56 = sphi 0, %s55
      %s72 = sphi 0, %s56
      %s76 = sphi 0, %s76
      %s78 = sphi 0, %s76
      %s79 = sphi 0, %s78
      %s93 = sphi 0, %s79
      %s97 = sphi 0, %s97
      %s99 = sphi 0, %s97
      %s100 = sphi 0, %s99
      %s114 = sphi 0, %s100
      %s118 = sphi 0, %s118
      %s120 = sphi 0, %s118
      %s121 = sphi 0, %s120
      %s135 = sphi 0, %s121
      %s139 = sphi 0, %s139
      %s141 = sphi 0, %s139
      %s142 = sphi 0, %s141
      %s156 = sphi 0, %s142
      %s162 = sphi 0, %s164
      %s165 = sphi 0, %s162
      %s166 = sphi 0, %s165
      %s182 = sphi 0, %s166
    $region4: #{gcn4_forward_prepared.1} parent=1 // loop_header_branch
      %19 = sbr.rel (%p17) target = $region8
    $region5: #{gcn4_forward_prepared.1} parent=1 // loop_body
      %s21 = ssub.s32 %s16, 1
      %s22 = ssub.s32 %s16, 2
      %s23 = sadd.s32 %s16, 1
      %s24 = ssub.s32 %s16, %s23
      %p25 = scmp.eq.s32.totalorder %s24, 0
      %s27 = sadd.s32 %s26, 1
      %s28 = scalar_select %p25, %s26, %s27
      %p31 = pneg %p25
      %p32 = scmp.eq.s32.totalorder %s16, 1
      %p33 = por %p31, %p32
      %p34 = scmp.ne.s32.totalorder %s26, %s29
      %p35 = scmp.eq.s32.totalorder %s16, 0
      %p36 = por %p34, %p35
      %p37 = scmp.ne.s32.totalorder %s26, %s29
      %p38 = scmp.eq.s32.totalorder %s21, 1
      %p39 = por %p37, %p38
      %p40 = scmp.ne.s32.totalorder %s29, %s30
      %p41 = scmp.eq.s32.totalorder %s21, 0
      %p42 = por %p40, %p41
      %p43 = scmp.ne.s32.totalorder %s29, %s30
      %p44 = scmp.eq.s32.totalorder %s22, 1
      %p45 = por %p43, %p44
      %p47 = scmp.ne.s32.totalorder %s30, %s46
      %p48 = scmp.eq.s32.totalorder %s22, 0
      %p49 = por %p47, %p48
      %s50 = ssub.s32 %s16, %s23
      %p51 = scmp.eq.s32.totalorder %s50, 0
      %s53 = sadd.s32 %s52, 1
      %s54 = scalar_select %p51, %s52, %s53
      %p57 = pneg %p51
      %p58 = scmp.eq.s32.totalorder %s16, 1
      %p59 = por %p57, %p58
      %p60 = scmp.ne.s32.totalorder %s52, %s55
      %p61 = scmp.eq.s32.totalorder %s16, 0
      %p62 = por %p60, %p61
      %p63 = scmp.ne.s32.totalorder %s52, %s55
      %p64 = scmp.eq.s32.totalorder %s21, 1
      %p65 = por %p63, %p64
      %p66 = scmp.ne.s32.totalorder %s55, %s56
      %p67 = scmp.eq.s32.totalorder %s21, 0
      %p68 = por %p66, %p67
      %p69 = scmp.ne.s32.totalorder %s55, %s56
      %p70 = scmp.eq.s32.totalorder %s22, 1
      %p71 = por %p69, %p70
      %p73 = scmp.ne.s32.totalorder %s56, %s72
      %p74 = scmp.eq.s32.totalorder %s22, 0
      %p75 = por %p73, %p74
      %s77 = sadd.s32 %s76, 1
      %p80 = scmp.eq.s32.totalorder %s16, 1
      %p81 = scmp.ne.s32.totalorder %s76, %s78
      %p82 = scmp.eq.s32.totalorder %s16, 0
      %p83 = por %p81, %p82
      %p84 = scmp.ne.s32.totalorder %s76, %s78
      %p85 = scmp.eq.s32.totalorder %s21, 1
      %p86 = por %p84, %p85
      %p87 = scmp.ne.s32.totalorder %s78, %s79
      %p88 = scmp.eq.s32.totalorder %s21, 0
      %p89 = por %p87, %p88
      %p90 = scmp.ne.s32.totalorder %s78, %s79
      %p91 = scmp.eq.s32.totalorder %s22, 1
      %p92 = por %p90, %p91
      %p94 = scmp.ne.s32.totalorder %s79, %s93
      %p95 = scmp.eq.s32.totalorder %s22, 0
      %p96 = por %p94, %p95
      %s98 = sadd.s32 %s97, 1
      %p101 = scmp.eq.s32.totalorder %s16, 1
      %p102 = scmp.ne.s32.totalorder %s97, %s99
      %p103 = scmp.eq.s32.totalorder %s16, 0
      %p104 = por %p102, %p103
      %p105 = scmp.ne.s32.totalorder %s97, %s99
      %p106 = scmp.eq.s32.totalorder %s21, 1
      %p107 = por %p105, %p106
      %p108 = scmp.ne.s32.totalorder %s99, %s100
      %p109 = scmp.eq.s32.totalorder %s21, 0
      %p110 = por %p108, %p109
      %p111 = scmp.ne.s32.totalorder %s99, %s100
      %p112 = scmp.eq.s32.totalorder %s22, 1
      %p113 = por %p111, %p112
      %p115 = scmp.ne.s32.totalorder %s100, %s114
      %p116 = scmp.eq.s32.totalorder %s22, 0
      %p117 = por %p115, %p116
      %s119 = sadd.s32 %s118, 1
      %p122 = scmp.eq.s32.totalorder %s16, 1
      %p123 = scmp.ne.s32.totalorder %s118, %s120
      %p124 = scmp.eq.s32.totalorder %s16, 0
      %p125 = por %p123, %p124
      %p126 = scmp.ne.s32.totalorder %s118, %s120
      %p127 = scmp.eq.s32.totalorder %s21, 1
      %p128 = por %p126, %p127
      %p129 = scmp.ne.s32.totalorder %s120, %s121
      %p130 = scmp.eq.s32.totalorder %s21, 0
      %p131 = por %p129, %p130
      %p132 = scmp.ne.s32.totalorder %s120, %s121
      %p133 = scmp.eq.s32.totalorder %s22, 1
      %p134 = por %p132, %p133
      %p136 = scmp.ne.s32.totalorder %s121, %s135
      %p137 = scmp.eq.s32.totalorder %s22, 0
      %p138 = por %p136, %p137
      %s140 = sadd.s32 %s139, 1
      %p143 = scmp.eq.s32.totalorder %s16, 1
      %p144 = scmp.ne.s32.totalorder %s139, %s141
      %p145 = scmp.eq.s32.totalorder %s16, 0
      %p146 = por %p144, %p145
      %p147 = scmp.ne.s32.totalorder %s139, %s141
      %p148 = scmp.eq.s32.totalorder %s21, 1
      %p149 = por %p147, %p148
      %p150 = scmp.ne.s32.totalorder %s141, %s142
      %p151 = scmp.eq.s32.totalorder %s21, 0
      %p152 = por %p150, %p151
      %p153 = scmp.ne.s32.totalorder %s141, %s142
      %p154 = scmp.eq.s32.totalorder %s22, 1
      %p155 = por %p153, %p154
      %p157 = scmp.ne.s32.totalorder %s142, %s156
      %p158 = scmp.eq.s32.totalorder %s22, 0
      %p159 = por %p157, %p158
      %s160 = ssub.s32 %s16, %s23
      %p161 = scmp.eq.s32.totalorder %s160, 0
      %s163 = sadd.s32 %s162, 1
      %s164 = scalar_select %p161, %s162, %s163
      %p167 = pneg %p161
      %p168 = scmp.eq.s32.totalorder %s16, 1
      %p169 = por %p167, %p168
      %p170 = scmp.ne.s32.totalorder %s162, %s165
      %p171 = scmp.eq.s32.totalorder %s16, 0
      %p172 = por %p170, %p171
      %p173 = scmp.ne.s32.totalorder %s162, %s165
      %p174 = scmp.eq.s32.totalorder %s21, 1
      %p175 = por %p173, %p174
      %p176 = scmp.ne.s32.totalorder %s165, %s166
      %p177 = scmp.eq.s32.totalorder %s21, 0
      %p178 = por %p176, %p177
      %p179 = scmp.ne.s32.totalorder %s165, %s166
      %p180 = scmp.eq.s32.totalorder %s22, 1
      %p181 = por %p179, %p180
      %p183 = scmp.ne.s32.totalorder %s166, %s182
      %p184 = scmp.eq.s32.totalorder %s22, 0
      %p185 = por %p183, %p184
      %p186 = scmp.le.s32.totalorder 1, %s16
      %p187 = scmp.lt.s32.totalorder %s16, 3
      %p188 = pnand %p186, %p187
      %p189 = pneg %p188
      // Predicated region
      $region9: #{gcn4_forward_prepared.1} parent=5 // pred_check
        _
      $region10: #{gcn4_forward_prepared.1} parent=5 // pred_check_branch
        %191 = sbr.rel (%p188) target = $region12
      $region11: #{gcn4_forward_prepared.1} parent=5 // pred_region
        %s192 = ssub.s32 %s16, 1
        // Predicated region
        $region13: #{gcn4_forward_prepared.1} parent=11 // pred_check
          %p193 = pneg %p89
        $region14: #{gcn4_forward_prepared.1} parent=11 // pred_check_branch
          %195 = sbr.rel (%p193) target = $region16
        $region15: #{gcn4_forward_prepared.1} parent=11 // pred_region
          _
        $region16: #{gcn4_forward_prepared.1} parent=11 // pred_fallthru
          _
        // Predicated region
        $region17: #{gcn4_forward_prepared.1} parent=11 // pred_check
          %p196 = pneg %p110
        $region18: #{gcn4_forward_prepared.1} parent=11 // pred_check_branch
          %198 = sbr.rel (%p196) target = $region20
        $region19: #{gcn4_forward_prepared.1} parent=11 // pred_region
          _
        $region20: #{gcn4_forward_prepared.1} parent=11 // pred_fallthru
          _
        // Predicated region
        $region21: #{gcn4_forward_prepared.1} parent=11 // pred_check
          %p199 = pneg %p131
        $region22: #{gcn4_forward_prepared.1} parent=11 // pred_check_branch
          %201 = sbr.rel (%p199) target = $region24
        $region23: #{gcn4_forward_prepared.1} parent=11 // pred_region
          %203 = vsyncadd [#allocation3], 0
          %s204 = sshll.u32 %s4, 4
          %s205 = int_to_ptr.hbm [resolvable:$true] %s204
          %s206 = sshll.u32 [#allocation2], 4
          %s207 = int_to_ptr.vmem [resolvable:$true] %s206
          %212 = dma.hbm_to_vmem [thread:$0]  %s205, 1024, %s207, [#allocation3], 64, 64, 4
        $region24: #{gcn4_forward_prepared.1} parent=11 // pred_fallthru
          _
        // Predicated region
        $region25: #{gcn4_forward_prepared.1} parent=11 // pred_check
          %p213 = pneg %p152
        $region26: #{gcn4_forward_prepared.1} parent=11 // pred_check_branch
          %215 = sbr.rel (%p213) target = $region28
        $region27: #{gcn4_forward_prepared.1} parent=11 // pred_region
          _
        $region28: #{gcn4_forward_prepared.1} parent=11 // pred_fallthru
          _
      $region12: #{gcn4_forward_prepared.1} parent=5 // pred_fallthru
        _
      %p216 = scmp.lt.s32.totalorder %s16, 2
      // Predicated region
      $region29: #{gcn4_forward_prepared.1} parent=5 // pred_check
        %p217 = pneg %p216
      $region30: #{gcn4_forward_prepared.1} parent=5 // pred_check_branch
        %219 = sbr.rel (%p217) target = $region32
      $region31: #{gcn4_forward_prepared.1} parent=5 // pred_region
        // Predicated region
        $region33: #{gcn4_forward_prepared.1} parent=31 // pred_check
          %p220 = pneg %p36
        $region34: #{gcn4_forward_prepared.1} parent=31 // pred_check_branch
          %222 = sbr.rel (%p220) target = $region36
        $region35: #{gcn4_forward_prepared.1} parent=31 // pred_region
          %p223 = scmp.lt.s32.totalorder %s16, 1
          %s224 = scalar_select %p223, %s16, 1
          %s225 = smul.addr %s224, 16
          %s226 = smul.addr %s225, 4
          %s227 = scalar_lea.vmem %s0, %s226
        $region36: #{gcn4_forward_prepared.1} parent=31 // pred_fallthru
          _
        // Predicated region
        $region37: #{gcn4_forward_prepared.1} parent=31 // pred_check
          %p228 = pneg %p62
        $region38: #{gcn4_forward_prepared.1} parent=31 // pred_check_branch
          %230 = sbr.rel (%p228) target = $region40
        $region39: #{gcn4_forward_prepared.1} parent=31 // pred_region
          %s231 = smul.u32 16, %s16
          %p232 = scmp.lt.s32.totalorder %s231, 31
          %s233 = scalar_select %p232, %s231, 31
          %s234 = smul.addr %s233, 4
          %s235 = scalar_lea.vmem %s1, %s234
          %s236 = smul.u32 16, %s16
        $region40: #{gcn4_forward_prepared.1} parent=31 // pred_fallthru
          _
      $region32: #{gcn4_forward_prepared.1} parent=5 // pred_fallthru
        _
      %p237 = scmp.le.s32.totalorder 1, %s16
      %p238 = scmp.lt.s32.totalorder %s16, 3
      %p239 = pnand %p237, %p238
      %p240 = pneg %p239
      // Predicated region
      $region41: #{gcn4_forward_prepared.1} parent=5 // pred_check
        _
      $region42: #{gcn4_forward_prepared.1} parent=5 // pred_check_branch
        %242 = sbr.rel (%p239) target = $region44
      $region43: #{gcn4_forward_prepared.1} parent=5 // pred_region
        %s243 = ssub.s32 %s16, 1
        // Predicated region
        $region45: #{gcn4_forward_prepared.1} parent=43 // pred_check
          %p244 = pneg %p131
        $region46: #{gcn4_forward_prepared.1} parent=43 // pred_check_branch
          %246 = sbr.rel (%p244) target = $region48
        $region47: #{gcn4_forward_prepared.1} parent=43 // pred_region
          %248 = dma.done [#allocation3], 1024
        $region48: #{gcn4_forward_prepared.1} parent=43 // pred_fallthru
          _
        %p249 = scmp.lt.s32.totalorder %s21, 1
        %s250 = scalar_select %p249, %s21, 1
        %s251 = smul.addr %s250, 16
        %s252 = smul.addr %s251, 4
        %s253 = scalar_lea.vmem %s0, %s252
        %p254 = pneg %p42
        %p255 = pneg %p39
        %s256 = smul.u32 16, %s21
        %p257 = scmp.lt.s32.totalorder %s256, 31
        %s258 = scalar_select %p257, %s256, 31
        %s259 = smul.addr %s258, 4
        %s260 = scalar_lea.vmem %s1, %s259
        %p261 = pneg %p68
        %p262 = pneg %p65
        %p263 = pneg %p89
        %p264 = pneg %p86
        %p265 = pneg %p110
        %p266 = pneg %p107
        %p267 = pneg %p131
        %p268 = pneg %p128
        %p269 = pneg %p152
        %p270 = pneg %p149
        %p271 = pneg %p178
        %p272 = pneg %p175
        %s273 = sand.u32 %s165, 1
        %s274 = scalar_lea.sflag [#allocation4], %s273
        %s275 = sand.u32 %s165, 1
        %s276 = smul.addr %s275, 128
        %s277 = scalar_lea.vmem [#allocation5], %s276
        %p278 = scmp.lt.s32.totalorder %s21, 1
        %s279 = scalar_select %p278, %s21, 1
        %s280 = smul.addr %s279, 16
        %s281 = smul.addr %s280, 4
        %s282 = scalar_lea.vmem %s0, %s281
        %s283 = smul.u32 16, %s21
        %p284 = scmp.lt.s32.totalorder %s283, 31
        %s285 = scalar_select %p284, %s283, 31
        %s286 = smul.addr %s285, 4
        %s287 = scalar_lea.vmem %s1, %s286
        %s288 = smul.u32 16, %s21
        %s289 = smul.u32 16, %s21
        %v291 = vld [vmem:[%s282] sm:$0xf]
        %v292 = vld [vmem:[%s282 + $0x4] sm:$0xf]
        %v293 = vld [vmem:[%s282 + $0x8] sm:$0xf]
        %v294 = vld [vmem:[%s282 + $0xc] sm:$0xf]
        %v295 = vld [vmem:[%s282 + $0x10] sm:$0xf]
        %v296 = vld [vmem:[%s282 + $0x14] sm:$0xf]
        %v297 = vld [vmem:[%s282 + $0x18] sm:$0xf]
        %v298 = vld [vmem:[%s282 + $0x1c] sm:$0xf]
        %v299 = vld [vmem:[%s282 + $0x20] sm:$0xf]
        %v300 = vld [vmem:[%s282 + $0x24] sm:$0xf]
        %v301 = vld [vmem:[%s282 + $0x28] sm:$0xf]
        %v302 = vld [vmem:[%s282 + $0x2c] sm:$0xf]
        %v303 = vld [vmem:[%s282 + $0x30] sm:$0xf]
        %v304 = vld [vmem:[%s282 + $0x34] sm:$0xf]
        %v305 = vld [vmem:[%s282 + $0x38] sm:$0xf]
        %v306 = vld [vmem:[%s282 + $0x3c] sm:$0xf]
        %v307 = vld [vmem:[%s287] sm:$0xf]
        %v308 = vld [vmem:[%s287 + $0x4] sm:$0xf]
        %v309 = vld [vmem:[%s287 + $0x8] sm:$0xf]
        %v310 = vld [vmem:[%s287 + $0xc] sm:$0xf]
        %v311 = vld [vmem:[%s287 + $0x10] sm:$0xf]
        %v312 = vld [vmem:[%s287 + $0x14] sm:$0xf]
        %v313 = vld [vmem:[%s287 + $0x18] sm:$0xf]
        %v314 = vld [vmem:[%s287 + $0x1c] sm:$0xf]
        %v315 = vld [vmem:[%s287 + $0x20] sm:$0xf]
        %v316 = vld [vmem:[%s287 + $0x24] sm:$0xf]
        %v317 = vld [vmem:[%s287 + $0x28] sm:$0xf]
        %v318 = vld [vmem:[%s287 + $0x2c] sm:$0xf]
        %v319 = vld [vmem:[%s287 + $0x30] sm:$0xf]
        %v320 = vld [vmem:[%s287 + $0x34] sm:$0xf]
        %v321 = vld [vmem:[%s287 + $0x38] sm:$0xf]
        %v322 = vld [vmem:[%s287 + $0x3c] sm:$0xf]
        %v323 = vld [vmem:[%s2] sm:$0xf]
        %v324 = vld [vmem:[%s2 + $0x4] sm:$0xf]
        %v341 = vunpack.c.l.b16 %v307
        %v342 = vunpack.c.l.b16 %v308
        %v343 = vunpack.c.l.b16 %v309
        %v344 = vunpack.c.l.b16 %v310
        %v345 = vunpack.c.l.b16 %v311
        %v346 = vunpack.c.l.b16 %v312
        %v347 = vunpack.c.l.b16 %v313
        %v348 = vunpack.c.l.b16 %v314
        %v349 = vunpack.c.l.b16 %v315
        %v350 = vunpack.c.l.b16 %v316
        %v351 = vunpack.c.l.b16 %v317
        %v352 = vunpack.c.l.b16 %v318
        %v353 = vunpack.c.l.b16 %v319
        %v354 = vunpack.c.l.b16 %v320
        %v355 = vunpack.c.l.b16 %v321
        %v356 = vunpack.c.l.b16 %v322
        %v357 = vpack.c.b16 %v342, %v341
        %v358 = vpack.c.b16 %v344, %v343
        %v359 = vpack.c.b16 %v346, %v345
        %v360 = vpack.c.b16 %v348, %v347
        %v361 = vpack.c.b16 %v350, %v349
        %v362 = vpack.c.b16 %v352, %v351
        %v363 = vpack.c.b16 %v354, %v353
        %v364 = vpack.c.b16 %v356, %v355
        %v367 = vunpack.c.l.b16 %v323
        %v368 = vunpack.c.l.b16 %v324
        %v369 = vpack.c.b16 %v368, %v367
        %vm371 = vcmask 130048
        %v373 = vsel %vm371, %v357, 0
        %v376 = vsel %vm371, %v358, 0
        %v379 = vsel %vm371, %v359, 0
        %v382 = vsel %vm371, %v360, 0
        %v385 = vsel %vm371, %v361, 0
        %v388 = vsel %vm371, %v362, 0
        %v391 = vsel %vm371, %v363, 0
        %v394 = vsel %vm371, %v364, 0
        %396 = vmatpush.bf16.msra.mxu0 0
        %397 = vmatpush.bf16.msra.mxu0 0
        %398 = vmatpush.bf16.msra.mxu0 0
        %399 = vmatpush.bf16.msra.mxu0 0
        %400 = vmatpush.bf16.msra.mxu0 0
        %401 = vmatpush.bf16.msra.mxu0 0
        %402 = vmatpush.bf16.msra.mxu0 0
        %403 = vmatpush.bf16.msra.mxu0 %v369
        %404 = vmatmul.bf16.gmra.mxu0 %v373
        %v405 = vpop.f32.mrf.mxu0
        %v406 = vadd.f32 0.0, %v405
        %v407 = vpop.f32.mrf.mxu0
        %v408 = vadd.f32 0.0, %v407
        %409 = vmatmul.bf16.gmra.mxu0 %v376
        %v410 = vpop.f32.mrf.mxu0
        %v411 = vadd.f32 0.0, %v410
        %v412 = vpop.f32.mrf.mxu0
        %v413 = vadd.f32 0.0, %v412
        %414 = vmatmul.bf16.gmra.mxu0 %v379
        %v415 = vpop.f32.mrf.mxu0
        %v416 = vadd.f32 0.0, %v415
        %v417 = vpop.f32.mrf.mxu0
        %v418 = vadd.f32 0.0, %v417
        %419 = vmatmul.bf16.gmra.mxu0 %v382
        %v420 = vpop.f32.mrf.mxu0
        %v421 = vadd.f32 0.0, %v420
        %v422 = vpop.f32.mrf.mxu0
        %v423 = vadd.f32 0.0, %v422
        %424 = vmatmul.bf16.gmra.mxu0 %v385
        %v425 = vpop.f32.mrf.mxu0
        %v426 = vadd.f32 0.0, %v425
        %v427 = vpop.f32.mrf.mxu0
        %v428 = vadd.f32 0.0, %v427
        %429 = vmatmul.bf16.gmra.mxu0 %v388
        %v430 = vpop.f32.mrf.mxu0
        %v431 = vadd.f32 0.0, %v430
        %v432 = vpop.f32.mrf.mxu0
        %v433 = vadd.f32 0.0, %v432
        %434 = vmatmul.bf16.gmra.mxu0 %v391
        %v435 = vpop.f32.mrf.mxu0
        %v436 = vadd.f32 0.0, %v435
        %v437 = vpop.f32.mrf.mxu0
        %v438 = vadd.f32 0.0, %v437
        %439 = vmatmul.bf16.gmra.mxu0 %v394
        %v440 = vpop.f32.mrf.mxu0
        %v441 = vadd.f32 0.0, %v440
        %v442 = vpop.f32.mrf.mxu0
        %v443 = vadd.f32 0.0, %v442
        %444 = vdwg.mxu0
        %v445 = vpack.c.bf16 %v408, %v406
        %v446 = vpack.c.bf16 %v413, %v411
        %v447 = vpack.c.bf16 %v418, %v416
        %v448 = vpack.c.bf16 %v423, %v421
        %v449 = vpack.c.bf16 %v428, %v426
        %v450 = vpack.c.bf16 %v433, %v431
        %v451 = vpack.c.bf16 %v438, %v436
        %v452 = vpack.c.bf16 %v443, %v441
        %v453 = vld [vmem:[%s3] sm:$0x1]
        %v455 = vperm.slane %v453, 0
        %v473 = vunpack.c.l.b16 %v291
        %v474 = vunpack.c.l.b16 %v292
        %v475 = vunpack.c.l.b16 %v293
        %v476 = vunpack.c.l.b16 %v294
        %v477 = vunpack.c.l.b16 %v295
        %v478 = vunpack.c.l.b16 %v296
        %v479 = vunpack.c.l.b16 %v297
        %v480 = vunpack.c.l.b16 %v298
        %v481 = vunpack.c.l.b16 %v299
        %v482 = vunpack.c.l.b16 %v300
        %v483 = vunpack.c.l.b16 %v301
        %v484 = vunpack.c.l.b16 %v302
        %v485 = vunpack.c.l.b16 %v303
        %v486 = vunpack.c.l.b16 %v304
        %v487 = vunpack.c.l.b16 %v305
        %v488 = vunpack.c.l.b16 %v306
        %v489 = vpack.c.b16 %v474, %v473
        %v490 = vpack.c.b16 %v476, %v475
        %v491 = vpack.c.b16 %v478, %v477
        %v492 = vpack.c.b16 %v480, %v479
        %v493 = vpack.c.b16 %v482, %v481
        %v494 = vpack.c.b16 %v484, %v483
        %v495 = vpack.c.b16 %v486, %v485
        %v496 = vpack.c.b16 %v488, %v487
        %505 = vmatpush.bf16.msra.mxu0 %v452
        %506 = vmatpush.bf16.msra.mxu0 %v451
        %507 = vmatpush.bf16.msra.mxu0 %v450
        %508 = vmatpush.bf16.msra.mxu0 %v449
        %509 = vmatpush.bf16.msra.mxu0 %v448
        %510 = vmatpush.bf16.msra.mxu0 %v447
        %511 = vmatpush.bf16.msra.mxu0 %v446
        %512 = vmatpush.bf16.msra.mxu0 %v445
        %513 = vmatmul.bf16.gmra.mxu0 %v489
        %v514 = vpop.f32.mrf.mxu0
        %v515 = vadd.f32 %v455, %v514
        %v516 = vpop.f32.mrf.mxu0
        %v517 = vadd.f32 %v455, %v516
        %518 = vmatmul.bf16.gmra.mxu0 %v490
        %v519 = vpop.f32.mrf.mxu0
        %v520 = vadd.f32 %v455, %v519
        %v521 = vpop.f32.mrf.mxu0
        %v522 = vadd.f32 %v455, %v521
        %523 = vmatmul.bf16.gmra.mxu0 %v491
        %v524 = vpop.f32.mrf.mxu0
        %v525 = vadd.f32 %v455, %v524
        %v526 = vpop.f32.mrf.mxu0
        %v527 = vadd.f32 %v455, %v526
        %528 = vmatmul.bf16.gmra.mxu0 %v492
        %v529 = vpop.f32.mrf.mxu0
        %v530 = vadd.f32 %v455, %v529
        %v531 = vpop.f32.mrf.mxu0
        %v532 = vadd.f32 %v455, %v531
        %533 = vmatmul.bf16.gmra.mxu0 %v493
        %v534 = vpop.f32.mrf.mxu0
        %v535 = vadd.f32 %v455, %v534
        %v536 = vpop.f32.mrf.mxu0
        %v537 = vadd.f32 %v455, %v536
        %538 = vmatmul.bf16.gmra.mxu0 %v494
        %v539 = vpop.f32.mrf.mxu0
        %v540 = vadd.f32 %v455, %v539
        %v541 = vpop.f32.mrf.mxu0
        %v542 = vadd.f32 %v455, %v541
        %543 = vmatmul.bf16.gmra.mxu0 %v495
        %v544 = vpop.f32.mrf.mxu0
        %v545 = vadd.f32 %v455, %v544
        %v546 = vpop.f32.mrf.mxu0
        %v547 = vadd.f32 %v455, %v546
        %548 = vmatmul.bf16.gmra.mxu0 %v496
        %v549 = vpop.f32.mrf.mxu0
        %v550 = vadd.f32 %v455, %v549
        %v551 = vpop.f32.mrf.mxu0
        %v552 = vadd.f32 %v455, %v551
        %553 = vdwg.mxu0
        %vm554 = vcmp.gt.f32.partialorder %v515, 0.0
        %vm555 = vcmp.gt.f32.partialorder %v517, 0.0
        %vm556 = vcmp.gt.f32.partialorder %v520, 0.0
        %vm557 = vcmp.gt.f32.partialorder %v522, 0.0
        %vm558 = vcmp.gt.f32.partialorder %v525, 0.0
        %vm559 = vcmp.gt.f32.partialorder %v527, 0.0
        %vm560 = vcmp.gt.f32.partialorder %v530, 0.0
        %vm561 = vcmp.gt.f32.partialorder %v532, 0.0
        %vm562 = vcmp.gt.f32.partialorder %v535, 0.0
        %vm563 = vcmp.gt.f32.partialorder %v537, 0.0
        %vm564 = vcmp.gt.f32.partialorder %v540, 0.0
        %vm565 = vcmp.gt.f32.partialorder %v542, 0.0
        %vm566 = vcmp.gt.f32.partialorder %v545, 0.0
        %vm567 = vcmp.gt.f32.partialorder %v547, 0.0
        %vm568 = vcmp.gt.f32.partialorder %v550, 0.0
        %vm569 = vcmp.gt.f32.partialorder %v552, 0.0
        %v570 = vmul.f32 %v515, 0.1
        %v571 = vmul.f32 %v517, 0.1
        %v572 = vmul.f32 %v520, 0.1
        %v573 = vmul.f32 %v522, 0.1
        %v574 = vmul.f32 %v525, 0.1
        %v575 = vmul.f32 %v527, 0.1
        %v576 = vmul.f32 %v530, 0.1
        %v577 = vmul.f32 %v532, 0.1
        %v578 = vmul.f32 %v535, 0.1
        %v579 = vmul.f32 %v537, 0.1
        %v580 = vmul.f32 %v540, 0.1
        %v581 = vmul.f32 %v542, 0.1
        %v582 = vmul.f32 %v545, 0.1
        %v583 = vmul.f32 %v547, 0.1
        %v584 = vmul.f32 %v550, 0.1
        %v585 = vmul.f32 %v552, 0.1
        %v586 = vsel %vm554, %v515, %v570
        %v587 = vsel %vm555, %v517, %v571
        %v588 = vsel %vm556, %v520, %v572
        %v589 = vsel %vm557, %v522, %v573
        %v590 = vsel %vm558, %v525, %v574
        %v591 = vsel %vm559, %v527, %v575
        %v592 = vsel %vm560, %v530, %v576
        %v593 = vsel %vm561, %v532, %v577
        %v594 = vsel %vm562, %v535, %v578
        %v595 = vsel %vm563, %v537, %v579
        %v596 = vsel %vm564, %v540, %v580
        %v597 = vsel %vm565, %v542, %v581
        %v598 = vsel %vm566, %v545, %v582
        %v599 = vsel %vm567, %v547, %v583
        %v600 = vsel %vm568, %v550, %v584
        %v601 = vsel %vm569, %v552, %v585
        %v602 = vpack.c.bf16 %v587, %v586
        %v603 = vpack.c.bf16 %v589, %v588
        %v604 = vpack.c.bf16 %v591, %v590
        %v605 = vpack.c.bf16 %v593, %v592
        %v606 = vpack.c.bf16 %v595, %v594
        %v607 = vpack.c.bf16 %v597, %v596
        %v608 = vpack.c.bf16 %v599, %v598
        %v609 = vpack.c.bf16 %v601, %v600
        %v610 = vld [vmem:[#allocation2] sm:$0xf]
        %v611 = vld [vmem:[#allocation2 + $0x4] sm:$0xf]
        %v612 = vld [vmem:[#allocation2 + $0x8] sm:$0xf]
        %v613 = vld [vmem:[#allocation2 + $0xc] sm:$0xf]
        %v614 = vld [vmem:[#allocation2 + $0x10] sm:$0xf]
        %v615 = vld [vmem:[#allocation2 + $0x14] sm:$0xf]
        %v616 = vld [vmem:[#allocation2 + $0x18] sm:$0xf]
        %v617 = vld [vmem:[#allocation2 + $0x1c] sm:$0xf]
        %v618 = vld [vmem:[#allocation2 + $0x20] sm:$0xf]
        %v619 = vld [vmem:[#allocation2 + $0x24] sm:$0xf]
        %v620 = vld [vmem:[#allocation2 + $0x28] sm:$0xf]
        %v621 = vld [vmem:[#allocation2 + $0x2c] sm:$0xf]
        %v622 = vld [vmem:[#allocation2 + $0x30] sm:$0xf]
        %v623 = vld [vmem:[#allocation2 + $0x34] sm:$0xf]
        %v624 = vld [vmem:[#allocation2 + $0x38] sm:$0xf]
        %v625 = vld [vmem:[#allocation2 + $0x3c] sm:$0xf]
        %v642 = vunpack.c.l.b16 %v610
        %v643 = vunpack.c.l.b16 %v611
        %v644 = vunpack.c.l.b16 %v612
        %v645 = vunpack.c.l.b16 %v613
        %v646 = vunpack.c.l.b16 %v614
        %v647 = vunpack.c.l.b16 %v615
        %v648 = vunpack.c.l.b16 %v616
        %v649 = vunpack.c.l.b16 %v617
        %v650 = vunpack.c.l.b16 %v618
        %v651 = vunpack.c.l.b16 %v619
        %v652 = vunpack.c.l.b16 %v620
        %v653 = vunpack.c.l.b16 %v621
        %v654 = vunpack.c.l.b16 %v622
        %v655 = vunpack.c.l.b16 %v623
        %v656 = vunpack.c.l.b16 %v624
        %v657 = vunpack.c.l.b16 %v625
        %v658 = vpack.c.b16 %v643, %v642
        %v659 = vpack.c.b16 %v645, %v644
        %v660 = vpack.c.b16 %v647, %v646
        %v661 = vpack.c.b16 %v649, %v648
        %v662 = vpack.c.b16 %v651, %v650
        %v663 = vpack.c.b16 %v653, %v652
        %v664 = vpack.c.b16 %v655, %v654
        %v665 = vpack.c.b16 %v657, %v656
        %674 = vmatpush.bf16.msra.mxu0 %v665
        %675 = vmatpush.bf16.msra.mxu0 %v664
        %676 = vmatpush.bf16.msra.mxu0 %v663
        %677 = vmatpush.bf16.msra.mxu0 %v662
        %678 = vmatpush.bf16.msra.mxu0 %v661
        %679 = vmatpush.bf16.msra.mxu0 %v660
        %680 = vmatpush.bf16.msra.mxu0 %v659
        %681 = vmatpush.bf16.msra.mxu0 %v658
        %682 = vmatmul.bf16.gmra.mxu0 %v602
        %v683 = vpop.f32.mrf.mxu0
        %v684 = vadd.f32 0.0, %v683
        %v685 = vpop.f32.mrf.mxu0
        %v686 = vadd.f32 0.0, %v685
        %687 = vmatmul.bf16.gmra.mxu0 %v603
        %v688 = vpop.f32.mrf.mxu0
        %v689 = vadd.f32 0.0, %v688
        %v690 = vpop.f32.mrf.mxu0
        %v691 = vadd.f32 0.0, %v690
        %692 = vmatmul.bf16.gmra.mxu0 %v604
        %v693 = vpop.f32.mrf.mxu0
        %v694 = vadd.f32 0.0, %v693
        %v695 = vpop.f32.mrf.mxu0
        %v696 = vadd.f32 0.0, %v695
        %697 = vmatmul.bf16.gmra.mxu0 %v605
        %v698 = vpop.f32.mrf.mxu0
        %v699 = vadd.f32 0.0, %v698
        %v700 = vpop.f32.mrf.mxu0
        %v701 = vadd.f32 0.0, %v700
        %702 = vmatmul.bf16.gmra.mxu0 %v606
        %v703 = vpop.f32.mrf.mxu0
        %v704 = vadd.f32 0.0, %v703
        %v705 = vpop.f32.mrf.mxu0
        %v706 = vadd.f32 0.0, %v705
        %707 = vmatmul.bf16.gmra.mxu0 %v607
        %v708 = vpop.f32.mrf.mxu0
        %v709 = vadd.f32 0.0, %v708
        %v710 = vpop.f32.mrf.mxu0
        %v711 = vadd.f32 0.0, %v710
        %712 = vmatmul.bf16.gmra.mxu0 %v608
        %v713 = vpop.f32.mrf.mxu0
        %v714 = vadd.f32 0.0, %v713
        %v715 = vpop.f32.mrf.mxu0
        %v716 = vadd.f32 0.0, %v715
        %717 = vmatmul.bf16.gmra.mxu0 %v609
        %v718 = vpop.f32.mrf.mxu0
        %v719 = vadd.f32 0.0, %v718
        %v720 = vpop.f32.mrf.mxu0
        %v721 = vadd.f32 0.0, %v720
        %722 = vdwg.mxu0
        %v723 = vpack.c.bf16 %v686, %v684
        %v724 = vpack.c.bf16 %v691, %v689
        %v725 = vpack.c.bf16 %v696, %v694
        %v726 = vpack.c.bf16 %v701, %v699
        %v727 = vpack.c.bf16 %v706, %v704
        %v728 = vpack.c.bf16 %v711, %v709
        %v729 = vpack.c.bf16 %v716, %v714
        %v730 = vpack.c.bf16 %v721, %v719
        %v731 = vld [vmem:[%s5] sm:$0x1]
        %v733 = vperm.slane %v731, 0
        %735 = vmatpush.bf16.msra.mxu0 %v730
        %736 = vmatpush.bf16.msra.mxu0 %v729
        %737 = vmatpush.bf16.msra.mxu0 %v728
        %738 = vmatpush.bf16.msra.mxu0 %v727
        %739 = vmatpush.bf16.msra.mxu0 %v726
        %740 = vmatpush.bf16.msra.mxu0 %v725
        %741 = vmatpush.bf16.msra.mxu0 %v724
        %742 = vmatpush.bf16.msra.mxu0 %v723
        %743 = vmatmul.bf16.gmra.mxu0 %v489
        %v744 = vpop.f32.mrf.mxu0
        %v745 = vadd.f32 %v733, %v744
        %v746 = vpop.f32.mrf.mxu0
        %v747 = vadd.f32 %v733, %v746
        %748 = vmatmul.bf16.gmra.mxu0 %v490
        %v749 = vpop.f32.mrf.mxu0
        %v750 = vadd.f32 %v733, %v749
        %v751 = vpop.f32.mrf.mxu0
        %v752 = vadd.f32 %v733, %v751
        %753 = vmatmul.bf16.gmra.mxu0 %v491
        %v754 = vpop.f32.mrf.mxu0
        %v755 = vadd.f32 %v733, %v754
        %v756 = vpop.f32.mrf.mxu0
        %v757 = vadd.f32 %v733, %v756
        %758 = vmatmul.bf16.gmra.mxu0 %v492
        %v759 = vpop.f32.mrf.mxu0
        %v760 = vadd.f32 %v733, %v759
        %v761 = vpop.f32.mrf.mxu0
        %v762 = vadd.f32 %v733, %v761
        %763 = vmatmul.bf16.gmra.mxu0 %v493
        %v764 = vpop.f32.mrf.mxu0
        %v765 = vadd.f32 %v733, %v764
        %v766 = vpop.f32.mrf.mxu0
        %v767 = vadd.f32 %v733, %v766
        %768 = vmatmul.bf16.gmra.mxu0 %v494
        %v769 = vpop.f32.mrf.mxu0
        %v770 = vadd.f32 %v733, %v769
        %v771 = vpop.f32.mrf.mxu0
        %v772 = vadd.f32 %v733, %v771
        %773 = vmatmul.bf16.gmra.mxu0 %v495
        %v774 = vpop.f32.mrf.mxu0
        %v775 = vadd.f32 %v733, %v774
        %v776 = vpop.f32.mrf.mxu0
        %v777 = vadd.f32 %v733, %v776
        %778 = vmatmul.bf16.gmra.mxu0 %v496
        %v779 = vpop.f32.mrf.mxu0
        %v780 = vadd.f32 %v733, %v779
        %v781 = vpop.f32.mrf.mxu0
        %v782 = vadd.f32 %v733, %v781
        %783 = vdwg.mxu0
        %784 = vst [vmem:[%s277] sm:$0xff] %v745
        %785 = vst [vmem:[%s277 + $0x8] sm:$0xff] %v747
        %786 = vst [vmem:[%s277 + $0x10] sm:$0xff] %v750
        %787 = vst [vmem:[%s277 + $0x18] sm:$0xff] %v752
        %788 = vst [vmem:[%s277 + $0x20] sm:$0xff] %v755
        %789 = vst [vmem:[%s277 + $0x28] sm:$0xff] %v757
        %790 = vst [vmem:[%s277 + $0x30] sm:$0xff] %v760
        %791 = vst [vmem:[%s277 + $0x38] sm:$0xff] %v762
        %792 = vst [vmem:[%s277 + $0x40] sm:$0xff] %v765
        %793 = vst [vmem:[%s277 + $0x48] sm:$0xff] %v767
        %794 = vst [vmem:[%s277 + $0x50] sm:$0xff] %v770
        %795 = vst [vmem:[%s277 + $0x58] sm:$0xff] %v772
        %796 = vst [vmem:[%s277 + $0x60] sm:$0xff] %v775
        %797 = vst [vmem:[%s277 + $0x68] sm:$0xff] %v777
        %798 = vst [vmem:[%s277 + $0x70] sm:$0xff] %v780
        %799 = vst [vmem:[%s277 + $0x78] sm:$0xff] %v782
        %s800 = sand.u32 %s165, 1
        %s801 = scalar_lea.sflag [#allocation4], %s800
        %s802 = sand.u32 %s165, 1
        %s803 = smul.addr %s802, 128
        %s804 = scalar_lea.vmem [#allocation5], %s803
        // Predicated region
        $region49: #{gcn4_forward_prepared.1} parent=43 // pred_check
          %p805 = pneg %p175
        $region50: #{gcn4_forward_prepared.1} parent=43 // pred_check_branch
          %807 = sbr.rel (%p805) target = $region52
        $region51: #{gcn4_forward_prepared.1} parent=43 // pred_region
          %s808 = smul.u32 16, %s21
          %810 = vsyncadd %s801, 0
          %s811 = smul.addr %s808, 8
          %s812 = scalar_lea.hbm %s6, %s811
          %s813 = sshll.u32 %s804, 4
          %s814 = int_to_ptr.vmem [resolvable:$true] %s813
          %s815 = sshll.u32 %s812, 4
          %s816 = int_to_ptr.hbm [resolvable:$true] %s815
          %821 = dma.vmem_to_hbm [thread:$0]  %s814, 2048, %s816, %s801, 128, 128, 8
        $region52: #{gcn4_forward_prepared.1} parent=43 // pred_fallthru
          _
      $region44: #{gcn4_forward_prepared.1} parent=5 // pred_fallthru
        _
      %p822 = scmp.le.s32.totalorder 2, %s16
      // Predicated region
      $region53: #{gcn4_forward_prepared.1} parent=5 // pred_check
        %p823 = pneg %p822
      $region54: #{gcn4_forward_prepared.1} parent=5 // pred_check_branch
        %825 = sbr.rel (%p823) target = $region56
      $region55: #{gcn4_forward_prepared.1} parent=5 // pred_region
        %s826 = ssub.s32 %s16, 2
        // Predicated region
        $region57: #{gcn4_forward_prepared.1} parent=55 // pred_check
          %p827 = pneg %p181
        $region58: #{gcn4_forward_prepared.1} parent=55 // pred_check_branch
          %829 = sbr.rel (%p827) target = $region60
        $region59: #{gcn4_forward_prepared.1} parent=55 // pred_region
          %s830 = sand.u32 %s166, 1
          %s831 = scalar_lea.sflag [#allocation4], %s830
          %s832 = sand.u32 %s166, 1
          %s833 = smul.addr %s832, 128
          %s834 = scalar_lea.vmem [#allocation5], %s833
          %836 = dma.done %s831, 2048
        $region60: #{gcn4_forward_prepared.1} parent=55 // pred_fallthru
          _
      $region56: #{gcn4_forward_prepared.1} parent=5 // pred_fallthru
        _
    $region6: #{gcn4_forward_prepared.1} parent=1 // loop_footer
      %s20 = sadd.s32 1, %s16
    $region7: #{gcn4_forward_prepared.1} parent=1 // loop_footer_branch
      %15 = sbr.rel target = $region3
    $region8: #{gcn4_forward_prepared.1} parent=1 // loop_exit
      _
    %837 = vsyncpa [#allocation3], 1
    %s838 = scalar_lea.sflag [#allocation3], 1
    %839 = vsyncpa %s838, 1
    %840 = vsyncpa [#allocation4], 1
    %s841 = scalar_lea.sflag [#allocation4], 1
    %842 = vsyncpa %s841, 1

</llo_original>
